<compile_context>
chip_gen: v7x
topology: tpu7x:2x2x1
jax: 0.10.0
libtpu: 0.0.40
codegen_flags: <defaults>
</compile_context>

<pallas_src>
import functools

import jax
import jax.numpy as jnp
from jax import lax
from jax.experimental import pallas as pl
from jax.experimental.pallas import tpu as pltpu


def _round_up(x: int, m: int) -> int:
    return ((x + m - 1) // m) * m


def _mmd_rbf_tile_kernel(neg_inv_bw_ref, sq_row_ref, sq_col_ref, col_w_ref,
                         rows_ref, cols_ref, out_ref, *,
                         kernel_num, use_square_chain):
    """One (tile x tile) tile of the multi-bandwidth RBF kernel matrix of
    [source; target]; accumulates column-weighted row sums into out_ref
    ((tile, 1)), which stays VMEM-resident across the j (reduction) axis."""
    j = pl.program_id(1)          # column-tile index ("arbitrary" reduction)

    @pl.when(j == 0)
    def _init():
        out_ref[...] = jnp.zeros_like(out_ref)

    a = rows_ref[...]             # (tile, F_pad), native dtype
    b = cols_ref[...]             # (tile, F_pad)

    # Gram tile on the MXU, contracting the feature axis of both operands
    # (no explicit transpose / XLU shuffle before the MXU).
    gram = lax.dot_general(a, b, dimension_numbers=(((1,), (1,)), ((), ())),
                           preferred_element_type=jnp.float32)      # (tm, tn)

    # Pairwise squared L2 from precomputed, lane-aligned norms; clamp tiny
    # negative FP cancellation to 0.
    l2 = jnp.maximum(sq_row_ref[...] + sq_col_ref[...] - 2.0 * gram, 0.0)

    if use_square_chain:
        # kernel_mul == 2: bandwidths form a geometric /2 chain, so
        # exp(-l2/bw_{k-1}) = exp(-l2/bw_k)^2.  One EUP exp (largest bandwidth,
        # smallest-magnitude exponent) + (kernel_num-1) VALU squarings.
        e = jnp.exp(l2 * neg_inv_bw_ref[kernel_num - 1])
        ksum = e
        for _ in range(kernel_num - 1):
            e = e * e
            ksum = ksum + e
    else:
        # Generic multi-bandwidth loop with hoisted scalars -1/bw_k (no divides).
        ksum = jnp.exp(l2 * neg_inv_bw_ref[0])
        for k in range(1, kernel_num):
            ksum = ksum + jnp.exp(l2 * neg_inv_bw_ref[k])

    # Rank-1 quadrant weights: only the column factor is applied here; the row
    # factor (including padded-row masking) is applied outside the kernel.
    out_ref[...] += jnp.sum(ksum * col_w_ref[...], axis=-1, keepdims=True)


@functools.partial(
    jax.jit, static_argnames=("kernel_mul", "kernel_num", "fix_sigma", "block_rows"))
def mmd_loss_rbf(source, target, kernel_mul=2.0, kernel_num=5, fix_sigma=None,
                 block_rows=256):
    """RBF MMD loss matching MMD_loss(kernel_type='rbf').forward(source, target).

    block_rows: row/column tile of the N x N kernel matrix; rounded to a
    multiple of 128 when N >= 128 (lane-dense DMAs).  256 suits the 2x256^2 MXU
    on v6e/v7x; on v6e (128 MiB VMEM) it can be raised to 512 for large N,
    on v7x (64 MiB VMEM) keep it <= 256-384 for large feature counts.
    """
    assert source.ndim == 2 and target.ndim == 2 and source.shape[1] == target.shape[1]
    n_src, feat = source.shape
    n_tgt = target.shape[0]
    if n_src == 0 or n_tgt == 0:
        raise ValueError("mmd_loss_rbf requires at least one source and one target sample")
    n = n_src + n_tgt
    kernel_num = int(kernel_num)
    kernel_mul = float(kernel_mul)

    # ---- O(N*F) glue (cheap vs. the O(N^2*F) kernel work) -------------------
    total = jnp.concatenate([source, target], axis=0)                  # (n, feat)
    tot32 = total.astype(jnp.float32)
    sq_all = jnp.sum(tot32 * tot32, axis=1)                            # (n,)

    # Closed-form bandwidth (no N^2 pass):
    #   sum_{i,j} ||x_i-x_j||^2 = 2*n*sum_i||x_i||^2 - 2*||sum_i x_i||^2
    if fix_sigma:   # NOTE: fix_sigma=0.0 treated as unset (matches PyTorch `if fix_sigma:`)
        bandwidth = jnp.float32(fix_sigma)
    else:
        col_sum = jnp.sum(tot32, axis=0)                               # (feat,)
        sum_l2 = 2.0 * n * jnp.sum(sq_all) - 2.0 * jnp.sum(col_sum * col_sum)
        bandwidth = sum_l2 / float(n * n - n)
    bandwidth = bandwidth / (kernel_mul ** (kernel_num // 2))
    neg_inv_bw = jnp.stack(
        [-1.0 / (bandwidth * (kernel_mul ** k)) for k in range(kernel_num)]
    ).astype(jnp.float32)                                              # (kernel_num,)

    # ---- padding / tiling ----------------------------------------------------
    feat_pad = _round_up(feat, 128)                 # lane-dense features
    if n >= 128:
        tile = min(_round_up(block_rows, 128), _round_up(n, 128))
    else:
        tile = _round_up(min(block_rows, n), 8)     # tiny-N / test path
    n_pad = _round_up(n, tile)

    total_pad = jnp.zeros((n_pad, feat_pad), total.dtype).at[:n, :feat].set(total)
    sq_row = jnp.zeros((n_pad, 1), jnp.float32).at[:n, 0].set(sq_all)
    sq_col = jnp.zeros((1, n_pad), jnp.float32).at[0, :n].set(sq_all)

    # Rank-1 quadrant weights w_ij = r_i * c_j:
    #   r_i = c_i = +1/n_src (source), -1/n_tgt (target), 0 (padding)
    # -> +1/b^2 (ss), +1/m^2 (tt), -1/(b*m) (cross), 0 on any padded row/col.
    idx = jnp.arange(n_pad)
    rc = jnp.where(idx < n_src, 1.0 / n_src,
                   jnp.where(idx < n, -1.0 / n_tgt, 0.0)).astype(jnp.float32)
    col_w = rc.reshape(1, n_pad)
    row_w = rc                                                          # (n_pad,)

    grid = (n_pad // tile, n_pad // tile)

    kernel = functools.partial(
        _mmd_rbf_tile_kernel,
        kernel_num=kernel_num,
        use_square_chain=(kernel_mul == 2.0),
    )

    # Explicit VMEM budget: rows + cols double-buffered, plus small vectors.
    itemsize = jnp.dtype(total.dtype).itemsize
    vmem_need = (2 * 2 * tile * feat_pad * itemsize          # rows + cols, x2 buffers
                 + 2 * 2 * 3 * tile * 4                      # sq_row/sq_col/col_w
                 + 2 * tile * 4)                             # output block
    vmem_limit = int(min(max(2 * vmem_need, 16 << 20), 100 << 20))

    cost = pl.CostEstimate(
        flops=2 * n_pad * n_pad * feat_pad + 8 * n_pad * n_pad,
        transcendentals=n_pad * n_pad * (1 if kernel_mul == 2.0 else kernel_num),
        bytes_accessed=(n_pad // tile) * n_pad * feat_pad * itemsize * 2,
    )

    partials = pl.pallas_call(
        kernel,
        out_shape=jax.ShapeDtypeStruct((n_pad, 1), jnp.float32),
        grid=grid,
        in_specs=[
            pl.BlockSpec(memory_space=pltpu.MemorySpace.SMEM),          # -1/bw_k
            pl.BlockSpec((tile, 1), lambda i, j: (i, 0)),               # row ||x||^2
            pl.BlockSpec((1, tile), lambda i, j: (0, j)),               # col ||x||^2
            pl.BlockSpec((1, tile), lambda i, j: (0, j)),               # col weight c_j
            pl.BlockSpec((tile, feat_pad), lambda i, j: (i, 0)),        # row tile
            pl.BlockSpec((tile, feat_pad), lambda i, j: (j, 0)),        # col tile
        ],
        out_specs=pl.BlockSpec((tile, 1), lambda i, j: (i, 0)),
        compiler_params=pltpu.CompilerParams(
            dimension_semantics=("parallel", "arbitrary"),
            vmem_limit_bytes=vmem_limit),
        cost_estimate=cost,
    )(neg_inv_bw, sq_row, sq_col, col_w, total_pad, total_pad)

    # Row factor (and padded-row masking) applied outside the kernel.
    return jnp.sum(partials[:, 0] * row_w)


def _mmd_loss_rbf_ref(source, target, kernel_mul=2.0, kernel_num=5):
    """Pure-JAX reference mirroring the PyTorch code (direct broadcast L2)."""
    b = source.shape[0]
    total = jnp.concatenate([source, target], axis=0).astype(jnp.float32)
    n = total.shape[0]
    diff = total[None, :, :] - total[:, None, :]
    l2 = jnp.sum(diff * diff, axis=2)
    bandwidth = jnp.sum(l2) / (n * n - n)
    bandwidth = bandwidth / (kernel_mul ** (kernel_num // 2))
    kernels = sum(jnp.exp(-l2 / (bandwidth * kernel_mul ** i)) for i in range(kernel_num))
    xx = jnp.mean(kernels[:b, :b])
    yy = jnp.mean(kernels[b:, b:])
    xy = jnp.mean(kernels[:b, b:])
    yx = jnp.mean(kernels[b:, :b])
    return xx + yy - xy - yx


if __name__ == "__main__":
    key = jax.random.PRNGKey(0)
    k1, k2, k3, k4, k5, k6 = jax.random.split(key, 6)

    # Case 1: tiny shapes (single tile): 8 samples each, 32 features.
    source = jax.random.normal(k1, (8, 32), dtype=jnp.float32)
    target = jax.random.normal(k2, (8, 32), dtype=jnp.float32) + 0.5
    loss = jax.block_until_ready(mmd_loss_rbf(source, target))
    ref = _mmd_loss_rbf_ref(source, target)
    assert jnp.allclose(loss, ref, rtol=5e-4, atol=1e-5), (loss, ref)

    # Case 2: unequal sample counts + small-tile multi-tile grid (padding,
    # rank-1 weights across tile boundaries, j-axis accumulation).
    source2 = jax.random.normal(k3, (24, 40), dtype=jnp.float32)
    target2 = jax.random.normal(k4, (16, 40), dtype=jnp.float32) + 0.25
    loss2 = jax.block_until_ready(mmd_loss_rbf(source2, target2, block_rows=16))
    ref2 = _mmd_loss_rbf_ref(source2, target2)
    assert jnp.allclose(loss2, ref2, rtol=5e-4, atol=5e-5), (loss2, ref2)

    # Case 3: N >= 128 -> 128-aligned tiles, 2x2 grid, exp-square chain.
    source3 = jax.random.normal(k5, (96, 64), dtype=jnp.float32)
    target3 = jax.random.normal(k6, (80, 64), dtype=jnp.float32) + 0.1
    loss3 = jax.block_until_ready(mmd_loss_rbf(source3, target3, block_rows=128))
    ref3 = _mmd_loss_rbf_ref(source3, target3)
    assert jnp.allclose(loss3, ref3, rtol=5e-4, atol=5e-5), (loss3, ref3)

    print("KERNEL_OK")
</pallas_src>

<mosaic_0001>
module attributes {stable_mosaic.version = 11 : i64} {
  func.func @_mmd_rbf_tile_kernel(%arg0: i32, %arg1: i32, %arg2: memref<5xf32, #tpu.memory_space<smem>>, %arg3: memref<16x1xf32, #tpu.memory_space<vmem>>, %arg4: memref<1x16xf32, #tpu.memory_space<vmem>>, %arg5: memref<1x16xf32, #tpu.memory_space<vmem>>, %arg6: memref<16x128xf32, #tpu.memory_space<vmem>>, %arg7: memref<16x128xf32, #tpu.memory_space<vmem>>, %arg8: memref<16x1xf32, #tpu.memory_space<vmem>>) attributes {dimension_semantics = [#tpu.dimension_semantics<parallel>, #tpu.dimension_semantics<arbitrary>], iteration_bounds = array<i64: 1, 1>, scalar_prefetch = 0 : i64, scratch_operands = 0 : i64, tpu.core_type = #tpu.core_type<tc>, window_params = [{transform_indices = @transform_0, window_bounds = array<i64: 5>}, {transform_indices = @transform_1, window_bounds = array<i64: 16, 1>}, {transform_indices = @transform_2, window_bounds = array<i64: 1, 16>}, {transform_indices = @transform_3, window_bounds = array<i64: 1, 16>}, {transform_indices = @transform_4, window_bounds = array<i64: 16, 128>}, {transform_indices = @transform_5, window_bounds = array<i64: 16, 128>}, {transform_indices = @transform_6, window_bounds = array<i64: 16, 1>}]} {
    %c0_i32 = arith.constant 0 : i32
    %0 = arith.cmpi eq, %arg1, %c0_i32 : i32
    %1 = arith.extui %0 : i1 to i32
    %c0_i32_0 = arith.constant 0 : i32
    %2 = arith.cmpi ne, %1, %c0_i32_0 : i32
    scf.if %2 {
      %cst_17 = arith.constant 0.000000e+00 : f32
      %36 = vector.broadcast %cst_17 : f32 to vector<16x1xf32>
      %c0_18 = arith.constant 0 : index
      %c0_19 = arith.constant 0 : index
      %37 = vector.load %arg8[%c0_18, %c0_19] : memref<16x1xf32, #tpu.memory_space<vmem>>, vector<16x1xf32>
      tpu.vector_store %arg8[%c0_18, %c0_19], %36 {strides = array<i32>} : memref<16x1xf32, #tpu.memory_space<vmem>>, vector<16x1xf32>,
    } else {
    }
    %c0 = arith.constant 0 : index
    %c0_1 = arith.constant 0 : index
    %3 = vector.load %arg6[%c0, %c0_1] : memref<16x128xf32, #tpu.memory_space<vmem>>, vector<16x128xf32>
    %c0_2 = arith.constant 0 : index
    %c0_3 = arith.constant 0 : index
    %4 = vector.load %arg7[%c0_2, %c0_3] : memref<16x128xf32, #tpu.memory_space<vmem>>, vector<16x128xf32>
    %cst = arith.constant dense<0.000000e+00> : vector<16x16xf32>
    %5 = tpu.matmul %3, %4, %cst {dimension_numbers = #tpu.dot_dimension_numbers<[1], [1], [0], [0], [0, 0, 1, 0], [], []>} : vector<16x128xf32>, vector<16x128xf32>, vector<16x16xf32> -> vector<16x16xf32>
    %c0_4 = arith.constant 0 : index
    %c0_5 = arith.constant 0 : index
    %6 = vector.load %arg3[%c0_4, %c0_5] : memref<16x1xf32, #tpu.memory_space<vmem>>, vector<16x1xf32>
    %c0_6 = arith.constant 0 : index
    %c0_7 = arith.constant 0 : index
    %7 = vector.load %arg4[%c0_6, %c0_7] : memref<1x16xf32, #tpu.memory_space<vmem>>, vector<1x16xf32>
    %8 = vector.broadcast %6 : vector<16x1xf32> to vector<16x16xf32>
    %9 = vector.broadcast %7 : vector<1x16xf32> to vector<16x16xf32>
    %10 = arith.addf %8, %9 : vector<16x16xf32>
    %cst_8 = arith.constant 2.000000e+00 : f32
    %11 = vector.broadcast %cst_8 : f32 to vector<16x16xf32>
    %12 = arith.mulf %11, %5 : vector<16x16xf32>
    %13 = arith.subf %10, %12 : vector<16x16xf32>
    %cst_9 = arith.constant 0.000000e+00 : f32
    %14 = vector.broadcast %cst_9 : f32 to vector<16x16xf32>
    %15 = arith.maximumf %13, %14 : vector<16x16xf32>
    %c4 = arith.constant 4 : index
    %16 = memref.load %arg2[%c4] : memref<5xf32, #tpu.memory_space<smem>>
    %17 = vector.broadcast %16 : f32 to vector<16x16xf32>
    %18 = arith.mulf %15, %17 : vector<16x16xf32>
    %19 = math.exp %18 : vector<16x16xf32>
    %20 = arith.mulf %19, %19 : vector<16x16xf32>
    %21 = arith.addf %19, %20 : vector<16x16xf32>
    %22 = arith.mulf %20, %20 : vector<16x16xf32>
    %23 = arith.addf %21, %22 : vector<16x16xf32>
    %24 = arith.mulf %22, %22 : vector<16x16xf32>
    %25 = arith.addf %23, %24 : vector<16x16xf32>
    %26 = arith.mulf %24, %24 : vector<16x16xf32>
    %27 = arith.addf %25, %26 : vector<16x16xf32>
    %c0_10 = arith.constant 0 : index
    %c0_11 = arith.constant 0 : index
    %28 = vector.load %arg8[%c0_10, %c0_11] : memref<16x1xf32, #tpu.memory_space<vmem>>, vector<16x1xf32>
    %c0_12 = arith.constant 0 : index
    %c0_13 = arith.constant 0 : index
    %29 = vector.load %arg5[%c0_12, %c0_13] : memref<1x16xf32, #tpu.memory_space<vmem>>, vector<1x16xf32>
    %30 = vector.broadcast %29 : vector<1x16xf32> to vector<16x16xf32>
    %31 = arith.mulf %27, %30 : vector<16x16xf32>
    %cst_14 = arith.constant dense<0.000000e+00> : vector<16xf32>
    %32 = vector.multi_reduction <add>, %31, %cst_14 [1] : vector<16x16xf32> to vector<16xf32>
    %33 = vector.shape_cast %32 : vector<16xf32> to vector<16x1xf32>
    %34 = arith.addf %28, %33 : vector<16x1xf32>
    %c0_15 = arith.constant 0 : index
    %c0_16 = arith.constant 0 : index
    %35 = vector.load %arg8[%c0_15, %c0_16] : memref<16x1xf32, #tpu.memory_space<vmem>>, vector<16x1xf32>
    tpu.vector_store %arg8[%c0_15, %c0_16], %34 {strides = array<i32>} : memref<16x1xf32, #tpu.memory_space<vmem>>, vector<16x1xf32>,
    return
  }
  func.func @transform_0(%arg0: i32, %arg1: i32) -> i32 {
    %c0_i32 = arith.constant 0 : i32
    %c0_i32_0 = arith.constant 0 : i32
    return %c0_i32 : i32
  }
  func.func @transform_1(%arg0: i32, %arg1: i32) -> (i32, i32) {
    %c0_i32 = arith.constant 0 : i32
    %c0_i32_0 = arith.constant 0 : i32
    return %arg0, %c0_i32 : i32, i32
  }
  func.func @transform_2(%arg0: i32, %arg1: i32) -> (i32, i32) {
    %c0_i32 = arith.constant 0 : i32
    %c0_i32_0 = arith.constant 0 : i32
    return %c0_i32, %arg1 : i32, i32
  }
  func.func @transform_3(%arg0: i32, %arg1: i32) -> (i32, i32) {
    %c0_i32 = arith.constant 0 : i32
    %c0_i32_0 = arith.constant 0 : i32
    return %c0_i32, %arg1 : i32, i32
  }
  func.func @transform_4(%arg0: i32, %arg1: i32) -> (i32, i32) {
    %c0_i32 = arith.constant 0 : i32
    %c0_i32_0 = arith.constant 0 : i32
    return %arg0, %c0_i32 : i32, i32
  }
  func.func @transform_5(%arg0: i32, %arg1: i32) -> (i32, i32) {
    %c0_i32 = arith.constant 0 : i32
    %c0_i32_0 = arith.constant 0 : i32
    return %arg1, %c0_i32 : i32, i32
  }
  func.func @transform_6(%arg0: i32, %arg1: i32) -> (i32, i32) {
    %c0_i32 = arith.constant 0 : i32
    %c0_i32_0 = arith.constant 0 : i32
    return %arg0, %c0_i32 : i32, i32
  }
}

</mosaic_0001>

<llo_original>
// kernel: mmd_loss_rbf.1
$region0: #{mmd_loss_rbf.1}
  #allocation0 [shape = 'u32[]', space=smem, size = 0x4, offset = 0x4, fixed_abs, tag = 'smem constant byte address 0x4 - core index']
  #allocation1 [shape = 'u32[144,128]{1,0:T(1,128)}', space=vmem, size = 0x12000, scoped, tag = 'internal scratch']
  %s0 = inlined_call_operand.vmem [shape: f32[5], index: 0, kind: input, shape index: {}]
  %s1 = inlined_call_operand.vmem [shape: f32[16,1], index: 1, kind: input, shape index: {}]
  %s2 = inlined_call_operand.vmem [shape: f32[1,16], index: 2, kind: input, shape index: {}]
  %s3 = inlined_call_operand.vmem [shape: f32[1,16], index: 3, kind: input, shape index: {}]
  %s4 = inlined_call_operand.vmem [shape: f32[16,128], index: 4, kind: input, shape index: {}, may-alias: {4,5}]
  %s5 = inlined_call_operand.vmem [shape: f32[16,128], index: 5, kind: input, shape index: {}, may-alias: {4,5}]
  %s6 = inlined_call_operand.vmem [shape: f32[16,1], index: 6, kind: output, shape index: {}]
  %s7 = sld [smem:[#allocation0]]
  $region42: #{mmd_loss_rbf.1} parent=0
    _
  %s9 = ssub.s32 1, %s7
  %s10 = scalar_select 0, %s9, %s7
  $region1: #{mmd_loss_rbf.1} parent=0
    #allocation2 [shape = 'u8[512]{0}', space=smem, size = 0x200, scoped, tag = 'input window, operand 0, single buffered']
    #allocation3 [shape = 's32[1]{0}', space=sflag, size = 0x4, scoped, tag = 'scoped memory for mmd_loss_rbf.1']
    %11 = vsyncpa [#allocation3], 0
    // Predicated region
    $region2: #{mmd_loss_rbf.1} parent=1 // pred_check
      _
    $region3: #{mmd_loss_rbf.1} parent=1 // pred_check_branch
      %13 = sbr.rel (0) target = $region5
    $region4: #{mmd_loss_rbf.1} parent=1 // pred_region
      %s15 = ssub.s32 16, 16
      %16 = vsyncadd [#allocation3], %s15
      %s18 = sshll.u32 %s0, 4
      %s19 = int_to_ptr.vmem [resolvable:$true] %s18
      %21 = dma.vmem_to_smem %s19, 16, [#allocation2], [#allocation3]
    $region5: #{mmd_loss_rbf.1} parent=1 // pred_fallthru
      _
    // Predicated region
    $region6: #{mmd_loss_rbf.1} parent=1 // pred_check
      _
    $region7: #{mmd_loss_rbf.1} parent=1 // pred_check_branch
      %23 = sbr.rel (0) target = $region9
    $region8: #{mmd_loss_rbf.1} parent=1 // pred_region
      _
    $region9: #{mmd_loss_rbf.1} parent=1 // pred_fallthru
      _
    // Predicated region
    $region10: #{mmd_loss_rbf.1} parent=1 // pred_check
      _
    $region11: #{mmd_loss_rbf.1} parent=1 // pred_check_branch
      %25 = sbr.rel (0) target = $region13
    $region12: #{mmd_loss_rbf.1} parent=1 // pred_region
      _
    $region13: #{mmd_loss_rbf.1} parent=1 // pred_fallthru
      _
    // Predicated region
    $region14: #{mmd_loss_rbf.1} parent=1 // pred_check
      _
    $region15: #{mmd_loss_rbf.1} parent=1 // pred_check_branch
      %27 = sbr.rel (0) target = $region17
    $region16: #{mmd_loss_rbf.1} parent=1 // pred_region
      _
    $region17: #{mmd_loss_rbf.1} parent=1 // pred_fallthru
      _
    // Predicated region
    $region18: #{mmd_loss_rbf.1} parent=1 // pred_check
      _
    $region19: #{mmd_loss_rbf.1} parent=1 // pred_check_branch
      %29 = sbr.rel (0) target = $region21
    $region20: #{mmd_loss_rbf.1} parent=1 // pred_region
      _
    $region21: #{mmd_loss_rbf.1} parent=1 // pred_fallthru
      _
    // Predicated region
    $region22: #{mmd_loss_rbf.1} parent=1 // pred_check
      _
    $region23: #{mmd_loss_rbf.1} parent=1 // pred_check_branch
      %31 = sbr.rel (0) target = $region25
    $region24: #{mmd_loss_rbf.1} parent=1 // pred_region
      _
    $region25: #{mmd_loss_rbf.1} parent=1 // pred_fallthru
      _
    // Predicated region
    $region26: #{mmd_loss_rbf.1} parent=1 // pred_check
      _
    $region27: #{mmd_loss_rbf.1} parent=1 // pred_check_branch
      %33 = sbr.rel (0) target = $region29
    $region28: #{mmd_loss_rbf.1} parent=1 // pred_region
      %34 = dma.done [#allocation3], 16
    $region29: #{mmd_loss_rbf.1} parent=1 // pred_fallthru
      _
    %35 = sfence
    %p36 = scmp.eq.s32.totalorder 0, 0
    // Predicated region
    $region30: #{mmd_loss_rbf.1} parent=1 // pred_check
      %p37 = pneg %p36
    $region31: #{mmd_loss_rbf.1} parent=1 // pred_check_branch
      %39 = sbr.rel (%p37) target = $region33
    $region32: #{mmd_loss_rbf.1} parent=1 // pred_region
      %vm40 = vcmask 7168
      %41 = vst.msk [vmem:[%s6] sm:$0xff] %vm40, 0.0
      %42 = vst.msk [vmem:[%s6 + $0x8] sm:$0xff] %vm40, 0.0
    $region33: #{mmd_loss_rbf.1} parent=1 // pred_fallthru
      _
    %v43 = vld [vmem:[%s4] sm:$0xff]
    %v44 = vld [vmem:[%s4 + $0x8] sm:$0xff]
    %v45 = vld [vmem:[%s5] sm:$0xff]
    %v46 = vld [vmem:[%s5 + $0x8] sm:$0xff]
    %47 = vmatprep.subr.mxu0 0.0
    %48 = vmatpush1.xpose.msra.mxu0 %v45
    %49 = vmatprep.subr.mxu0 0.0
    %50 = vmatpush1.xpose.msra.mxu0 %v46
    %51 = vmatprep.subr.mxu0 0.0
    %52 = vmatpush1.xpose.msra.mxu0 0.0
    %53 = vmatprep.subr.mxu0 0.0
    %54 = vmatpush1.xpose.msra.mxu0 0.0
    %55 = vmatprep.subr.mxu0 0.0
    %56 = vmatpush1.xpose.msra.mxu0 0.0
    %57 = vmatprep.subr.mxu0 0.0
    %58 = vmatpush1.xpose.msra.mxu0 0.0
    %59 = vmatprep.subr.mxu0 0.0
    %60 = vmatpush1.xpose.msra.mxu0 0.0
    %61 = vmatprep.subr.mxu0 0.0
    %62 = vmatpush1.xpose.msra.mxu0 0.0
    %63 = vmatprep.subr.mxu0 0.0
    %64 = vmatpush1.xpose.msra.mxu0 0.0
    %65 = vmatprep.subr.mxu0 0.0
    %66 = vmatpush1.xpose.msra.mxu0 0.0
    %67 = vmatprep.subr.mxu0 0.0
    %68 = vmatpush1.xpose.msra.mxu0 0.0
    %69 = vmatprep.subr.mxu0 0.0
    %70 = vmatpush1.xpose.msra.mxu0 0.0
    %71 = vmatprep.subr.mxu0 0.0
    %72 = vmatpush1.xpose.msra.mxu0 0.0
    %73 = vmatprep.subr.mxu0 0.0
    %74 = vmatpush1.xpose.msra.mxu0 0.0
    %75 = vmatprep.subr.mxu0 0.0
    %76 = vmatpush1.xpose.msra.mxu0 0.0
    %77 = vmatprep.subr.mxu0 0.0
    %78 = vmatpush1.xpose.msra.mxu0 0.0
    %79 = vmatprep.subr.mxu0 0.0
    %80 = vmatpush1.xpose.msra.mxu0 0.0
    %81 = vmatprep.subr.mxu0 0.0
    %82 = vmatpush1.xpose.msra.mxu0 0.0
    %83 = vmatprep.subr.mxu0 0.0
    %84 = vmatpush1.xpose.msra.mxu0 0.0
    %85 = vmatprep.subr.mxu0 0.0
    %86 = vmatpush1.xpose.msra.mxu0 0.0
    %87 = vmatprep.subr.mxu0 0.0
    %88 = vmatpush1.xpose.msra.mxu0 0.0
    %89 = vmatprep.subr.mxu0 0.0
    %90 = vmatpush1.xpose.msra.mxu0 0.0
    %91 = vmatprep.subr.mxu0 0.0
    %92 = vmatpush1.xpose.msra.mxu0 0.0
    %93 = vmatprep.subr.mxu0 0.0
    %94 = vmatpush1.xpose.msra.mxu0 0.0
    %95 = vmatprep.subr.mxu0 0.0
    %96 = vmatpush1.xpose.msra.mxu0 0.0
    %97 = vmatprep.subr.mxu0 0.0
    %98 = vmatpush1.xpose.msra.mxu0 0.0
    %99 = vmatprep.subr.mxu0 0.0
    %100 = vmatpush1.xpose.msra.mxu0 0.0
    %101 = vmatprep.subr.mxu0 0.0
    %102 = vmatpush1.xpose.msra.mxu0 0.0
    %103 = vmatprep.subr.mxu0 0.0
    %104 = vmatpush1.xpose.msra.mxu0 0.0
    %105 = vmatprep.subr.mxu0 0.0
    %106 = vmatpush1.xpose.msra.mxu0 0.0
    %107 = vmatprep.subr.mxu0 0.0
    %108 = vmatpush1.xpose.msra.mxu0 0.0
    %109 = vmatprep.subr.mxu0 0.0
    %110 = vmatpush1.xpose.msra.mxu0 0.0
    %111 = vmatprep.mubr.f32.mxu0 0.0
    %112 = vmatmul.mubr.f32.gmra.mrb[0].mxu0 %v43
    %v113 = vpop.f32.mrb[0].mxu0
    %v114 = vadd.f32 0.0, %v113
    %v115 = vpop.f32.mrb[0].mxu0
    %116 = vmatprep.mubr.f32.mxu0 0.0
    %117 = vmatmul.mubr.f32.gmra.mrb[0].mxu0 %v44
    %v118 = vpop.f32.mrb[0].mxu0
    %v119 = vadd.f32 0.0, %v118
    %v120 = vpop.f32.mrb[0].mxu0
    %121 = vdwg.mxu0
    %v122 = vld [vmem:[%s1] sm:$0xff]
    %v123 = vld [vmem:[%s1 + $0x8] sm:$0xff]
    %v124 = vld [vmem:[%s2] sm:$0x1]
    %126 = vset.pattern.permute.xlu0 0
    %127 = vperm.xlu0 %126, %v122
    %v128 = vpop.permute.xlu0 %127
    %131 = vset.pattern.permute.xlu0 0
    %132 = vperm.xlu0 %131, %v123
    %v133 = vpop.permute.xlu0 %132
    %v136 = vlaneseq
    %v137 = vshrl.u32 %v136, 7
    %v138 = vsub.s32 0, %v137
    %v139 = vrot.slane %v124, %v138
    %v141 = vadd.f32 %v128, %v139
    %v142 = vadd.f32 %v133, %v139
    %v143 = vmul.f32 %v114, 2.0
    %v144 = vmul.f32 %v119, 2.0
    %v145 = vsub.f32 %v141, %v143
    %v146 = vsub.f32 %v142, %v144
    %v147 = vmax.f32 %v145, 0.0
    %v148 = vmax.f32 %v146, 0.0
    %s149 = sld [smem:[#allocation2 + $0x4]]
    %v150 = vstv %s149
    %v151 = vmul.f32 %v147, %v150
    %v152 = vmul.f32 %v148, %v150
    %v153 = vmul.f32 %v151, 1.442695
    %v154 = vpow.pop %v153
    %v155 = vmul.f32 %v152, 1.442695
    %v156 = vpow.pop %v155
    %v157 = vmul.f32 %v154, %v154
    %v158 = vmul.f32 %v156, %v156
    %v159 = vadd.f32 %v154, %v157
    %v160 = vadd.f32 %v156, %v158
    %v161 = vmul.f32 %v157, %v157
    %v162 = vmul.f32 %v158, %v158
    %v163 = vadd.f32 %v159, %v161
    %v164 = vadd.f32 %v160, %v162
    %v165 = vmul.f32 %v161, %v161
    %v166 = vmul.f32 %v162, %v162
    %v167 = vadd.f32 %v163, %v165
    %v168 = vadd.f32 %v164, %v166
    %v169 = vmul.f32 %v165, %v165
    %v170 = vmul.f32 %v166, %v166
    %v171 = vadd.f32 %v167, %v169
    %v172 = vadd.f32 %v168, %v170
    %v173 = vld [vmem:[%s6] sm:$0xff]
    %v174 = vld [vmem:[%s6 + $0x8] sm:$0xff]
    %v175 = vld [vmem:[%s3] sm:$0x1]
    %v177 = vlaneseq
    %v178 = vshrl.u32 %v177, 7
    %v179 = vsub.s32 0, %v178
    %v180 = vrot.slane %v175, %v179
    %v182 = vmul.f32 %v171, %v180
    %v183 = vmul.f32 %v172, %v180
    %vm184 = vcmask 130048
    %v185 = vsel %vm184, %v182, 0.0
    %186 = vadd.xlane.f32.xlu0 %v185
    %v187 = vpop.xlane.xlu0 %186
    %v188 = vsel %vm184, %v183, 0.0
    %189 = vadd.xlane.f32.xlu0 %v188
    %v190 = vpop.xlane.xlu0 %189
    %v191 = vadd.f32 %v173, %v187
    %v192 = vadd.f32 %v174, %v190
    %vm193 = vcmask 7168
    %194 = vst.msk [vmem:[%s6] sm:$0xff] %vm193, %v191
    %195 = vst.msk [vmem:[%s6 + $0x8] sm:$0xff] %vm193, %v192
    // Predicated region
    $region34: #{mmd_loss_rbf.1} parent=1 // pred_check
      _
    $region35: #{mmd_loss_rbf.1} parent=1 // pred_check_branch
      %197 = sbr.rel (0) target = $region37
    $region36: #{mmd_loss_rbf.1} parent=1 // pred_region
      _
    $region37: #{mmd_loss_rbf.1} parent=1 // pred_fallthru
      _
    // Predicated region
    $region38: #{mmd_loss_rbf.1} parent=1 // pred_check
      _
    $region39: #{mmd_loss_rbf.1} parent=1 // pred_check_branch
      %199 = sbr.rel (0) target = $region41
    $region40: #{mmd_loss_rbf.1} parent=1 // pred_region
      _
    $region41: #{mmd_loss_rbf.1} parent=1 // pred_fallthru
      _
    %200 = vsyncpa [#allocation3], 1

</llo_original>
